<compile_context>
chip_gen: v5e
topology: v5e:2x2
jax: 0.10.0
libtpu: 0.0.40
codegen_flags: <defaults>
</compile_context>

<pallas_src>
import jax
import jax.numpy as jnp
from jax.experimental import pallas as pl
from jax.experimental.pallas import tpu as pltpu

FEED_EMBEDDING_SIZE = 512
EMBEDDING_DIM = 20
MID_DIM = 64

_INV_SQRT2 = 0.7071067811865476


def _gelu_exact(x):
    # PyTorch nn.GELU() default is the exact (erf-based) GELU.
    return x * 0.5 * (1.0 + jax.lax.erf(x * _INV_SQRT2))


def _mvl_kernel(aid_ref, feed_ref, uv2_ref, ui_ref,
                wa_ref, wf_ref, wv_ref, bps_ref,
                wu_ref, bu_ref, scale_ref, bias_ref,
                out_ref):
    # Fused play|stay projection of time_base without materialising the
    # concat:  h = [aid | feed | uv2] @ [wp | ws]  ->  (TB, 128)
    h = (jnp.dot(aid_ref[...], wa_ref[...], preferred_element_type=jnp.float32)
         + jnp.dot(feed_ref[...], wf_ref[...], preferred_element_type=jnp.float32)
         + jnp.dot(uv2_ref[...], wv_ref[...], preferred_element_type=jnp.float32)
         + bps_ref[...])
    # Fused uinfo projections:  u = uinfo @ [wu0 | wu1]  ->  (TB, 128)
    u = jnp.dot(ui_ref[...], wu_ref[...], preferred_element_type=jnp.float32) + bu_ref[...]

    # torch.matmul((B,1,64),(B,64,1)) == per-row dot; done as a masked lane
    # reduction over the fused 128-lane product.
    prod = h * u                                                     # (TB, 128)
    lane = jax.lax.broadcasted_iota(jnp.int32, prod.shape, 1)
    is_play = lane < MID_DIM
    play = jnp.sum(jnp.where(is_play, prod, 0.0), axis=-1, keepdims=True)  # (TB,1)
    stay = jnp.sum(jnp.where(is_play, 0.0, prod), axis=-1, keepdims=True)  # (TB,1)

    col = jax.lax.broadcasted_iota(jnp.int32, out_ref.shape, 1)      # (TB, 2)
    scores = jnp.where(col == 0, play, stay)                         # (TB, 2)

    # map[i] is a Linear(1, 1):  y = x * w + b, folded into (1, 2) scale/bias.
    out_ref[...] = _gelu_exact(scores) * scale_ref[...] + bias_ref[...]


def _batch_tile(b, tile=None):
    if tile is not None:
        return tile  # caller-supplied; must be a multiple of 8
    # Cap TB so two double-buffered f32 tiles (~TB*555*4 B each) stay well
    # under the 16 MiB default scoped VMEM (v5e) and v7x's 64 MiB physical.
    if b <= 2048:
        return max(8, ((b + 7) // 8) * 8)
    return 2048


def mvl_pallas_scores(aid, feed_embedding, uv2, uinfo, fp, *, tile=None):
    b = aid.shape[0]
    tb = _batch_tile(b, tile)
    b_pad = ((b + tb - 1) // tb) * tb
    if b_pad != b:
        pad = ((0, b_pad - b), (0, 0))
        aid = jnp.pad(aid, pad)
        feed_embedding = jnp.pad(feed_embedding, pad)
        uv2 = jnp.pad(uv2, pad)
        uinfo = jnp.pad(uinfo, pad)

    def row_spec(d):
        # batch-tiled activation stream, auto double-buffered
        return pl.BlockSpec((tb, d), lambda i: (i, 0))

    def resident(arr):
        # whole weight, constant block index -> stays resident in VMEM
        return pl.BlockSpec(arr.shape, lambda i: (0, 0))

    out = pl.pallas_call(
        _mvl_kernel,
        out_shape=jax.ShapeDtypeStruct((b_pad, 2), jnp.float32),
        grid=(b_pad // tb,),
        in_specs=[row_spec(EMBEDDING_DIM),
                  row_spec(FEED_EMBEDDING_SIZE),
                  row_spec(2),
                  row_spec(EMBEDDING_DIM + 1),
                  resident(fp["w_aid"]), resident(fp["w_feed"]),
                  resident(fp["w_uv"]), resident(fp["b_ps"]),
                  resident(fp["w_u"]), resident(fp["b_u"]),
                  resident(fp["map_scale"]), resident(fp["map_bias"])],
        out_specs=pl.BlockSpec((tb, 2), lambda i: (i, 0)),
        compiler_params=pltpu.CompilerParams(
            dimension_semantics=("parallel",)),
    )(aid, feed_embedding, uv2, uinfo,
      fp["w_aid"], fp["w_feed"], fp["w_uv"], fp["b_ps"],
      fp["w_u"], fp["b_u"], fp["map_scale"], fp["map_bias"])

    return out[:b, 0:1], out[:b, 1:2]


def _smooth_l1(pred, target):
    # nn.SmoothL1Loss() defaults: beta=1.0, reduction='mean'
    d = pred - target
    ad = jnp.abs(d)
    return jnp.mean(jnp.where(ad < 1.0, 0.5 * d * d, ad - 0.5))


def mvl_forward(fused_params, aid, feed_embedding, uv_info, uinfo, mode, *, tile=None):
    batch = aid.shape[0]
    play_time, stay_time = mvl_pallas_scores(
        aid, feed_embedding, uv_info[:, :2], uinfo, fused_params, tile=tile)

    pmv_loss = None
    if mode == "test":
        uv_info = uv_info + jnp.concatenate(
            [jnp.zeros((batch, 2), jnp.float32), play_time, stay_time], axis=-1)
    elif mode == "train":
        pmv_loss = [_smooth_l1(play_time, uv_info[:, -2:-1]),
                    _smooth_l1(stay_time, uv_info[:, -1:])]
    elif mode == "validate":
        # Returned as jnp scalars so this stays jit-safe (PyTorch's .tolist()
        # would force a host sync; call float() eagerly if needed).
        pmv_loss = [jnp.mean(play_time - uv_info[:, -2:-1]),
                    jnp.mean(stay_time - uv_info[:, -1:])]
    return pmv_loss, uv_info


def init_params(key):
    """Parameters in the original nn.Module layout."""
    d_tb = FEED_EMBEDDING_SIZE + EMBEDDING_DIM + 2     # 534
    d_ui = EMBEDDING_DIM + 1                           # 21
    ks = jax.random.split(key, 9)

    def lin(kw, kb, d_in, d_out):
        bound = 1.0 / jnp.sqrt(jnp.float32(d_in))
        w = jax.random.uniform(kw, (d_in, d_out), jnp.float32, -bound, bound)
        b = jax.random.uniform(kb, (1, d_out), jnp.float32, -bound, bound)
        return w, b

    wp, bp = lin(ks[0], ks[1], d_tb, MID_DIM)
    ws, bs = lin(ks[2], ks[3], d_tb, MID_DIM)
    wu0, bu0 = lin(ks[4], ks[5], d_ui, MID_DIM)
    wu1, bu1 = lin(ks[6], ks[7], d_ui, MID_DIM)
    # map[0], map[1] are Linear(1,1): [w0, b0, w1, b1]
    m = jax.random.uniform(ks[8], (4,), jnp.float32, -1.0, 1.0)
    return dict(wp=wp, bp=bp, ws=ws, bs=bs,
                wu0=wu0, bu0=bu0, wu1=wu1, bu1=bu1, map=m)


def fuse_params(p):
    """One-time repack into the fused/split layout used by the kernel."""
    w = jnp.concatenate([p["wp"], p["ws"]], axis=1)                       # (534, 128)
    return dict(
        w_aid=w[:EMBEDDING_DIM],                                          # (20, 128)
        w_feed=w[EMBEDDING_DIM:EMBEDDING_DIM + FEED_EMBEDDING_SIZE],      # (512, 128)
        w_uv=w[EMBEDDING_DIM + FEED_EMBEDDING_SIZE:],                     # (2, 128)
        b_ps=jnp.concatenate([p["bp"], p["bs"]], axis=1),                 # (1, 128)
        w_u=jnp.concatenate([p["wu0"], p["wu1"]], axis=1),                # (21, 128)
        b_u=jnp.concatenate([p["bu0"], p["bu1"]], axis=1),                # (1, 128)
        map_scale=jnp.stack([p["map"][0], p["map"][2]])[None, :],         # (1, 2)
        map_bias=jnp.stack([p["map"][1], p["map"][3]])[None, :],          # (1, 2)
    )


def mvl_reference_scores(p, aid, feed_embedding, uv_info, uinfo):
    """Pure-JAX reference matching the PyTorch module math (unfused)."""
    tb = jnp.concatenate([aid, feed_embedding, uv_info[:, :2]], axis=-1)
    h_play = tb @ p["wp"] + p["bp"]
    h_stay = tb @ p["ws"] + p["bs"]
    u0 = uinfo @ p["wu0"] + p["bu0"]
    u1 = uinfo @ p["wu1"] + p["bu1"]
    play = jnp.sum(h_play * u0, axis=-1, keepdims=True)
    stay = jnp.sum(h_stay * u1, axis=-1, keepdims=True)
    play = _gelu_exact(play) * p["map"][0] + p["map"][1]
    stay = _gelu_exact(stay) * p["map"][2] + p["map"][3]
    return play, stay


if __name__ == "__main__":
    import numpy as np

    key = jax.random.PRNGKey(0)
    kp, ka, kf, kuv, kui = jax.random.split(key, 5)

    batch = 2
    params = init_params(kp)
    fp = fuse_params(params)
    aid = jax.random.normal(ka, (batch, EMBEDDING_DIM), jnp.float32)
    feed_embedding = jax.random.normal(kf, (batch, FEED_EMBEDDING_SIZE), jnp.float32)
    uv_info = jax.random.normal(kuv, (batch, 4), jnp.float32)
    uinfo = jax.random.normal(kui, (batch, EMBEDDING_DIM + 1), jnp.float32)

    # test mode: returns updated uv_info
    _, uv_out = mvl_forward(fp, aid, feed_embedding, uv_info, uinfo, "test")
    jax.block_until_ready(uv_out)

    # train mode: returns smooth-L1 losses
    losses, _ = mvl_forward(fp, aid, feed_embedding, uv_info, uinfo, "train")
    jax.block_until_ready(losses)

    # validate mode: returns mean residuals (jnp scalars)
    val, _ = mvl_forward(fp, aid, feed_embedding, uv_info, uinfo, "validate")
    jax.block_until_ready(val)

    # correctness vs pure-JAX reference (same math, unfused weights)
    p_ref, s_ref = mvl_reference_scores(params, aid, feed_embedding, uv_info, uinfo)
    p_ker, s_ker = mvl_pallas_scores(aid, feed_embedding, uv_info[:, :2], uinfo, fp)
    np.testing.assert_allclose(np.asarray(p_ker), np.asarray(p_ref), rtol=1e-3, atol=1e-3)
    np.testing.assert_allclose(np.asarray(s_ker), np.asarray(s_ref), rtol=1e-3, atol=1e-3)

    # exercise the multi-step batch grid (padding + pipelined tiles)
    batch2 = 40
    ka2, kf2, kuv2, kui2 = jax.random.split(jax.random.PRNGKey(1), 4)
    aid2 = jax.random.normal(ka2, (batch2, EMBEDDING_DIM), jnp.float32)
    feed2 = jax.random.normal(kf2, (batch2, FEED_EMBEDDING_SIZE), jnp.float32)
    uvi2 = jax.random.normal(kuv2, (batch2, 4), jnp.float32)
    ui2 = jax.random.normal(kui2, (batch2, EMBEDDING_DIM + 1), jnp.float32)
    p2, s2 = mvl_pallas_scores(aid2, feed2, uvi2[:, :2], ui2, fp, tile=16)
    p2r, s2r = mvl_reference_scores(params, aid2, feed2, uvi2, ui2)
    np.testing.assert_allclose(np.asarray(p2), np.asarray(p2r), rtol=1e-3, atol=1e-3)
    np.testing.assert_allclose(np.asarray(s2), np.asarray(s2r), rtol=1e-3, atol=1e-3)

    print("KERNEL_OK")
</pallas_src>

<mosaic_0001>
module attributes {stable_mosaic.version = 11 : i64} {
  func.func @_mvl_kernel(%arg0: i32, %arg1: memref<8x20xf32, #tpu.memory_space<vmem>>, %arg2: memref<8x512xf32, #tpu.memory_space<vmem>>, %arg3: memref<8x2xf32, #tpu.memory_space<vmem>>, %arg4: memref<8x21xf32, #tpu.memory_space<vmem>>, %arg5: memref<20x128xf32, #tpu.memory_space<vmem>>, %arg6: memref<512x128xf32, #tpu.memory_space<vmem>>, %arg7: memref<2x128xf32, #tpu.memory_space<vmem>>, %arg8: memref<1x128xf32, #tpu.memory_space<vmem>>, %arg9: memref<21x128xf32, #tpu.memory_space<vmem>>, %arg10: memref<1x128xf32, #tpu.memory_space<vmem>>, %arg11: memref<1x2xf32, #tpu.memory_space<vmem>>, %arg12: memref<1x2xf32, #tpu.memory_space<vmem>>, %arg13: memref<8x2xf32, #tpu.memory_space<vmem>>) attributes {dimension_semantics = [#tpu.dimension_semantics<parallel>], iteration_bounds = array<i64: 1>, scalar_prefetch = 0 : i64, scratch_operands = 0 : i64, tpu.core_type = #tpu.core_type<tc>, window_params = [{transform_indices = @transform_0, window_bounds = array<i64: 8, 20>}, {transform_indices = @transform_1, window_bounds = array<i64: 8, 512>}, {transform_indices = @transform_2, window_bounds = array<i64: 8, 2>}, {transform_indices = @transform_3, window_bounds = array<i64: 8, 21>}, {pipeline_mode = #tpu.pipeline_mode<synchronous>, transform_indices = @transform_4, window_bounds = array<i64: 20, 128>}, {pipeline_mode = #tpu.pipeline_mode<synchronous>, transform_indices = @transform_5, window_bounds = array<i64: 512, 128>}, {pipeline_mode = #tpu.pipeline_mode<synchronous>, transform_indices = @transform_6, window_bounds = array<i64: 2, 128>}, {pipeline_mode = #tpu.pipeline_mode<synchronous>, transform_indices = @transform_7, window_bounds = array<i64: 1, 128>}, {pipeline_mode = #tpu.pipeline_mode<synchronous>, transform_indices = @transform_8, window_bounds = array<i64: 21, 128>}, {pipeline_mode = #tpu.pipeline_mode<synchronous>, transform_indices = @transform_9, window_bounds = array<i64: 1, 128>}, {pipeline_mode = #tpu.pipeline_mode<synchronous>, transform_indices = @transform_10, window_bounds = array<i64: 1, 2>}, {pipeline_mode = #tpu.pipeline_mode<synchronous>, transform_indices = @transform_11, window_bounds = array<i64: 1, 2>}, {transform_indices = @transform_12, window_bounds = array<i64: 8, 2>}]} {
    %c0 = arith.constant 0 : index
    %c0_0 = arith.constant 0 : index
    %0 = vector.load %arg1[%c0, %c0_0] : memref<8x20xf32, #tpu.memory_space<vmem>>, vector<8x20xf32>
    %c0_1 = arith.constant 0 : index
    %c0_2 = arith.constant 0 : index
    %1 = vector.load %arg5[%c0_1, %c0_2] : memref<20x128xf32, #tpu.memory_space<vmem>>, vector<20x128xf32>
    %cst = arith.constant dense<0.000000e+00> : vector<8x128xf32>
    %2 = tpu.matmul %0, %1, %cst {dimension_numbers = #tpu.dot_dimension_numbers<[1], [0], [0], [1], [0, 0, 1, 1], [], []>} : vector<8x20xf32>, vector<20x128xf32>, vector<8x128xf32> -> vector<8x128xf32>
    %c0_3 = arith.constant 0 : index
    %c0_4 = arith.constant 0 : index
    %3 = vector.load %arg2[%c0_3, %c0_4] : memref<8x512xf32, #tpu.memory_space<vmem>>, vector<8x512xf32>
    %c0_5 = arith.constant 0 : index
    %c0_6 = arith.constant 0 : index
    %4 = vector.load %arg6[%c0_5, %c0_6] : memref<512x128xf32, #tpu.memory_space<vmem>>, vector<512x128xf32>
    %cst_7 = arith.constant dense<0.000000e+00> : vector<8x128xf32>
    %5 = tpu.matmul %3, %4, %cst_7 {dimension_numbers = #tpu.dot_dimension_numbers<[1], [0], [0], [1], [0, 0, 1, 1], [], []>} : vector<8x512xf32>, vector<512x128xf32>, vector<8x128xf32> -> vector<8x128xf32>
    %6 = arith.addf %2, %5 : vector<8x128xf32>
    %c0_8 = arith.constant 0 : index
    %c0_9 = arith.constant 0 : index
    %7 = vector.load %arg3[%c0_8, %c0_9] : memref<8x2xf32, #tpu.memory_space<vmem>>, vector<8x2xf32>
    %c0_10 = arith.constant 0 : index
    %c0_11 = arith.constant 0 : index
    %8 = vector.load %arg7[%c0_10, %c0_11] : memref<2x128xf32, #tpu.memory_space<vmem>>, vector<2x128xf32>
    %cst_12 = arith.constant dense<0.000000e+00> : vector<8x128xf32>
    %9 = tpu.matmul %7, %8, %cst_12 {dimension_numbers = #tpu.dot_dimension_numbers<[1], [0], [0], [1], [0, 0, 1, 1], [], []>} : vector<8x2xf32>, vector<2x128xf32>, vector<8x128xf32> -> vector<8x128xf32>
    %10 = arith.addf %6, %9 : vector<8x128xf32>
    %c0_13 = arith.constant 0 : index
    %c0_14 = arith.constant 0 : index
    %11 = vector.load %arg8[%c0_13, %c0_14] : memref<1x128xf32, #tpu.memory_space<vmem>>, vector<1x128xf32>
    %12 = vector.broadcast %11 : vector<1x128xf32> to vector<8x128xf32>
    %13 = arith.addf %10, %12 : vector<8x128xf32>
    %c0_15 = arith.constant 0 : index
    %c0_16 = arith.constant 0 : index
    %14 = vector.load %arg4[%c0_15, %c0_16] : memref<8x21xf32, #tpu.memory_space<vmem>>, vector<8x21xf32>
    %c0_17 = arith.constant 0 : index
    %c0_18 = arith.constant 0 : index
    %15 = vector.load %arg9[%c0_17, %c0_18] : memref<21x128xf32, #tpu.memory_space<vmem>>, vector<21x128xf32>
    %cst_19 = arith.constant dense<0.000000e+00> : vector<8x128xf32>
    %16 = tpu.matmul %14, %15, %cst_19 {dimension_numbers = #tpu.dot_dimension_numbers<[1], [0], [0], [1], [0, 0, 1, 1], [], []>} : vector<8x21xf32>, vector<21x128xf32>, vector<8x128xf32> -> vector<8x128xf32>
    %c0_20 = arith.constant 0 : index
    %c0_21 = arith.constant 0 : index
    %17 = vector.load %arg10[%c0_20, %c0_21] : memref<1x128xf32, #tpu.memory_space<vmem>>, vector<1x128xf32>
    %18 = vector.broadcast %17 : vector<1x128xf32> to vector<8x128xf32>
    %19 = arith.addf %16, %18 : vector<8x128xf32>
    %20 = arith.mulf %13, %19 : vector<8x128xf32>
    %21 = tpu.iota {dimensions = array<i32: 1>} : vector<8x128xi32>
    %c64_i32 = arith.constant 64 : i32
    %22 = vector.broadcast %c64_i32 : i32 to vector<8x128xi32>
    %23 = arith.cmpi slt, %21, %22 : vector<8x128xi32>
    %cst_22 = arith.constant 0.000000e+00 : f32
    %24 = vector.broadcast %cst_22 : f32 to vector<8x128xf32>
    %25 = arith.select %23, %20, %24 : vector<8x128xi1>, vector<8x128xf32>
    %cst_23 = arith.constant dense<0.000000e+00> : vector<8xf32>
    %26 = vector.multi_reduction <add>, %25, %cst_23 [1] : vector<8x128xf32> to vector<8xf32>
    %27 = vector.shape_cast %26 : vector<8xf32> to vector<8x1xf32>
    %cst_24 = arith.constant 0.000000e+00 : f32
    %28 = vector.broadcast %cst_24 : f32 to vector<8x128xf32>
    %29 = arith.select %23, %28, %20 : vector<8x128xi1>, vector<8x128xf32>
    %cst_25 = arith.constant dense<0.000000e+00> : vector<8xf32>
    %30 = vector.multi_reduction <add>, %29, %cst_25 [1] : vector<8x128xf32> to vector<8xf32>
    %31 = vector.shape_cast %30 : vector<8xf32> to vector<8x1xf32>
    %32 = tpu.iota {dimensions = array<i32: 1>} : vector<8x2xi32>
    %c0_i32 = arith.constant 0 : i32
    %33 = vector.broadcast %c0_i32 : i32 to vector<8x2xi32>
    %34 = arith.cmpi eq, %32, %33 : vector<8x2xi32>
    %35 = vector.shape_cast %27 : vector<8x1xf32> to vector<8x1xf32>
    %36 = vector.broadcast %35 : vector<8x1xf32> to vector<8x2xf32>
    %37 = vector.shape_cast %31 : vector<8x1xf32> to vector<8x1xf32>
    %38 = vector.broadcast %37 : vector<8x1xf32> to vector<8x2xf32>
    %39 = arith.select %34, %36, %38 : vector<8x2xi1>, vector<8x2xf32>
    %cst_26 = arith.constant 5.000000e-01 : f32
    %40 = vector.broadcast %cst_26 : f32 to vector<8x2xf32>
    %41 = arith.mulf %39, %40 : vector<8x2xf32>
    %cst_27 = arith.constant 0.707106769 : f32
    %42 = vector.broadcast %cst_27 : f32 to vector<8x2xf32>
    %43 = arith.mulf %39, %42 : vector<8x2xf32>
    %44 = math.erf %43 : vector<8x2xf32>
    %cst_28 = arith.constant 1.000000e+00 : f32
    %45 = vector.broadcast %cst_28 : f32 to vector<8x2xf32>
    %46 = arith.addf %45, %44 : vector<8x2xf32>
    %47 = arith.mulf %41, %46 : vector<8x2xf32>
    %c0_29 = arith.constant 0 : index
    %c0_30 = arith.constant 0 : index
    %48 = vector.load %arg11[%c0_29, %c0_30] : memref<1x2xf32, #tpu.memory_space<vmem>>, vector<1x2xf32>
    %49 = vector.broadcast %48 : vector<1x2xf32> to vector<8x2xf32>
    %50 = arith.mulf %47, %49 : vector<8x2xf32>
    %c0_31 = arith.constant 0 : index
    %c0_32 = arith.constant 0 : index
    %51 = vector.load %arg12[%c0_31, %c0_32] : memref<1x2xf32, #tpu.memory_space<vmem>>, vector<1x2xf32>
    %52 = vector.broadcast %51 : vector<1x2xf32> to vector<8x2xf32>
    %53 = arith.addf %50, %52 : vector<8x2xf32>
    %c0_33 = arith.constant 0 : index
    %c0_34 = arith.constant 0 : index
    %54 = vector.load %arg13[%c0_33, %c0_34] : memref<8x2xf32, #tpu.memory_space<vmem>>, vector<8x2xf32>
    tpu.vector_store %arg13[%c0_33, %c0_34], %53 {strides = array<i32>} : memref<8x2xf32, #tpu.memory_space<vmem>>, vector<8x2xf32>,
    return
  }
  func.func @transform_0(%arg0: i32) -> (i32, i32) {
    %c0_i32 = arith.constant 0 : i32
    %c0_i32_0 = arith.constant 0 : i32
    return %arg0, %c0_i32 : i32, i32
  }
  func.func @transform_1(%arg0: i32) -> (i32, i32) {
    %c0_i32 = arith.constant 0 : i32
    %c0_i32_0 = arith.constant 0 : i32
    return %arg0, %c0_i32 : i32, i32
  }
  func.func @transform_2(%arg0: i32) -> (i32, i32) {
    %c0_i32 = arith.constant 0 : i32
    %c0_i32_0 = arith.constant 0 : i32
    return %arg0, %c0_i32 : i32, i32
  }
  func.func @transform_3(%arg0: i32) -> (i32, i32) {
    %c0_i32 = arith.constant 0 : i32
    %c0_i32_0 = arith.constant 0 : i32
    return %arg0, %c0_i32 : i32, i32
  }
  func.func @transform_4(%arg0: i32) -> (i32, i32) {
    %c0_i32 = arith.constant 0 : i32
    %c0_i32_0 = arith.constant 0 : i32
    %c0_i32_1 = arith.constant 0 : i32
    return %c0_i32, %c0_i32_0 : i32, i32
  }
  func.func @transform_5(%arg0: i32) -> (i32, i32) {
    %c0_i32 = arith.constant 0 : i32
    %c0_i32_0 = arith.constant 0 : i32
    %c0_i32_1 = arith.constant 0 : i32
    return %c0_i32, %c0_i32_0 : i32, i32
  }
  func.func @transform_6(%arg0: i32) -> (i32, i32) {
    %c0_i32 = arith.constant 0 : i32
    %c0_i32_0 = arith.constant 0 : i32
    %c0_i32_1 = arith.constant 0 : i32
    return %c0_i32, %c0_i32_0 : i32, i32
  }
  func.func @transform_7(%arg0: i32) -> (i32, i32) {
    %c0_i32 = arith.constant 0 : i32
    %c0_i32_0 = arith.constant 0 : i32
    %c0_i32_1 = arith.constant 0 : i32
    return %c0_i32, %c0_i32_0 : i32, i32
  }
  func.func @transform_8(%arg0: i32) -> (i32, i32) {
    %c0_i32 = arith.constant 0 : i32
    %c0_i32_0 = arith.constant 0 : i32
    %c0_i32_1 = arith.constant 0 : i32
    return %c0_i32, %c0_i32_0 : i32, i32
  }
  func.func @transform_9(%arg0: i32) -> (i32, i32) {
    %c0_i32 = arith.constant 0 : i32
    %c0_i32_0 = arith.constant 0 : i32
    %c0_i32_1 = arith.constant 0 : i32
    return %c0_i32, %c0_i32_0 : i32, i32
  }
  func.func @transform_10(%arg0: i32) -> (i32, i32) {
    %c0_i32 = arith.constant 0 : i32
    %c0_i32_0 = arith.constant 0 : i32
    %c0_i32_1 = arith.constant 0 : i32
    return %c0_i32, %c0_i32_0 : i32, i32
  }
  func.func @transform_11(%arg0: i32) -> (i32, i32) {
    %c0_i32 = arith.constant 0 : i32
    %c0_i32_0 = arith.constant 0 : i32
    %c0_i32_1 = arith.constant 0 : i32
    return %c0_i32, %c0_i32_0 : i32, i32
  }
  func.func @transform_12(%arg0: i32) -> (i32, i32) {
    %c0_i32 = arith.constant 0 : i32
    %c0_i32_0 = arith.constant 0 : i32
    return %arg0, %c0_i32 : i32, i32
  }
}

</mosaic_0001>

<llo_original>
// kernel: tpu_custom_call.1
$region0: #{tpu_custom_call.1}
  #allocation0 [shape = 'u32[]', space=smem, size = 0x4, offset = 0x4, fixed_abs, tag = 'smem constant byte address 0x4 - core index']
  #allocation1 [shape = 'u32[72,128]{1,0:T(1,128)}', space=vmem, size = 0x9000, scoped, tag = 'internal scratch']
  %s0 = inlined_call_operand.vmem [shape: f32[8,20], index: 0, kind: input, shape index: {}]
  %s1 = inlined_call_operand.hbm [shape: f32[8,512], index: 1, kind: input, shape index: {}]
  %s2 = inlined_call_operand.vmem [shape: f32[8,2], index: 2, kind: input, shape index: {}]
  %s3 = inlined_call_operand.hbm [shape: f32[8,21], index: 3, kind: input, shape index: {}]
  %s4 = inlined_call_operand.hbm [shape: f32[20,128], index: 4, kind: input, shape index: {}]
  %s5 = inlined_call_operand.hbm [shape: f32[512,128], index: 5, kind: input, shape index: {}]
  %s6 = inlined_call_operand.vmem [shape: f32[2,128], index: 6, kind: input, shape index: {}]
  %s7 = inlined_call_operand.vmem [shape: f32[1,128], index: 7, kind: input, shape index: {}]
  %s8 = inlined_call_operand.hbm [shape: f32[21,128], index: 8, kind: input, shape index: {}]
  %s9 = inlined_call_operand.vmem [shape: f32[1,128], index: 9, kind: input, shape index: {}]
  %s10 = inlined_call_operand.vmem [shape: f32[1,2], index: 10, kind: input, shape index: {}]
  %s11 = inlined_call_operand.vmem [shape: f32[1,2], index: 11, kind: input, shape index: {}]
  %s12 = inlined_call_operand.vmem [shape: f32[8,2], index: 12, kind: output, shape index: {}]
  %s13 = sld [smem:[#allocation0]]
  $region78: #{tpu_custom_call.1} parent=0
    _
  %s15 = ssub.s32 1, %s13
  %s16 = scalar_select 0, %s15, %s13
  $region1: #{tpu_custom_call.1} parent=0
    #allocation2 [shape = 'u8[16384]{0}', space=vmem, size = 0x4000, scoped, tag = 'input window, operand 1, single buffered']
    #allocation3 [shape = 's32[1]{0}', space=sflag, size = 0x4, scoped, tag = 'scoped memory for tpu_custom_call.1']
    #allocation4 [shape = 'u8[4096]{0}', space=vmem, size = 0x1000, scoped, tag = 'input window, operand 3, single buffered']
    #allocation5 [shape = 's32[1]{0}', space=sflag, size = 0x4, scoped, tag = 'scoped memory for tpu_custom_call.1']
    #allocation6 [shape = 'u8[12288]{0}', space=vmem, size = 0x3000, scoped, tag = 'input window, operand 4, single buffered']
    #allocation7 [shape = 'u8[262144]{0}', space=vmem, size = 0x40000, scoped, tag = 'input window, operand 5, single buffered']
    #allocation8 [shape = 's32[1]{0}', space=sflag, size = 0x4, scoped, tag = 'scoped memory for tpu_custom_call.1']
    #allocation9 [shape = 'u8[12288]{0}', space=vmem, size = 0x3000, scoped, tag = 'input window, operand 8, single buffered']
    %17 = vsyncpa [#allocation3], 0
    %18 = vsyncpa [#allocation5], 0
    %19 = vsyncpa [#allocation8], 0
    // Predicated region
    $region2: #{tpu_custom_call.1} parent=1 // pred_check
      _
    $region3: #{tpu_custom_call.1} parent=1 // pred_check_branch
      %21 = sbr.rel (0) target = $region5
    $region4: #{tpu_custom_call.1} parent=1 // pred_region
      _
    $region5: #{tpu_custom_call.1} parent=1 // pred_fallthru
      _
    // Predicated region
    $region6: #{tpu_custom_call.1} parent=1 // pred_check
      _
    $region7: #{tpu_custom_call.1} parent=1 // pred_check_branch
      %23 = sbr.rel (0) target = $region9
    $region8: #{tpu_custom_call.1} parent=1 // pred_region
      %25 = vsyncadd [#allocation3], 0
      %s27 = sshll.u32 %s1, 4
      %s28 = int_to_ptr.hbm [resolvable:$true] %s27
      %s29 = sshll.u32 [#allocation2], 4
      %s30 = int_to_ptr.vmem [resolvable:$true] %s29
      %32 = dma.hbm_to_vmem [thread:$0]  %s28, 512, %s30, [#allocation3]
    $region9: #{tpu_custom_call.1} parent=1 // pred_fallthru
      _
    // Predicated region
    $region10: #{tpu_custom_call.1} parent=1 // pred_check
      _
    $region11: #{tpu_custom_call.1} parent=1 // pred_check_branch
      %34 = sbr.rel (0) target = $region13
    $region12: #{tpu_custom_call.1} parent=1 // pred_region
      _
    $region13: #{tpu_custom_call.1} parent=1 // pred_fallthru
      _
    // Predicated region
    $region14: #{tpu_custom_call.1} parent=1 // pred_check
      _
    $region15: #{tpu_custom_call.1} parent=1 // pred_check_branch
      %36 = sbr.rel (0) target = $region17
    $region16: #{tpu_custom_call.1} parent=1 // pred_region
      %38 = vsyncadd [#allocation5], 0
      %s40 = sshll.u32 %s3, 4
      %s41 = int_to_ptr.hbm [resolvable:$true] %s40
      %s42 = sshll.u32 [#allocation4], 4
      %s43 = int_to_ptr.vmem [resolvable:$true] %s42
      %45 = dma.hbm_to_vmem [thread:$0]  %s41, 128, %s43, [#allocation5]
    $region17: #{tpu_custom_call.1} parent=1 // pred_fallthru
      _
    // Predicated region
    $region18: #{tpu_custom_call.1} parent=1 // pred_check
      _
    $region19: #{tpu_custom_call.1} parent=1 // pred_check_branch
      %47 = sbr.rel (0) target = $region21
    $region20: #{tpu_custom_call.1} parent=1 // pred_region
      %49 = vsyncadd [#allocation5], 0
      %s50 = sshll.u32 %s4, 4
      %s51 = int_to_ptr.hbm [resolvable:$true] %s50
      %s52 = sshll.u32 [#allocation6], 4
      %s53 = int_to_ptr.vmem [resolvable:$true] %s52
      %58 = dma.hbm_to_vmem [thread:$0]  %s51, 384, %s53, [#allocation5], 128, 128, 8
    $region21: #{tpu_custom_call.1} parent=1 // pred_fallthru
      _
    // Predicated region
    $region22: #{tpu_custom_call.1} parent=1 // pred_check
      _
    $region23: #{tpu_custom_call.1} parent=1 // pred_check_branch
      %60 = sbr.rel (0) target = $region25
    $region24: #{tpu_custom_call.1} parent=1 // pred_region
      %62 = vsyncadd [#allocation8], 0
      %s63 = sshll.u32 %s5, 4
      %s64 = int_to_ptr.hbm [resolvable:$true] %s63
      %s65 = sshll.u32 [#allocation7], 4
      %s66 = int_to_ptr.vmem [resolvable:$true] %s65
      %71 = dma.hbm_to_vmem [thread:$0]  %s64, 8192, %s66, [#allocation8], 128, 128, 8
    $region25: #{tpu_custom_call.1} parent=1 // pred_fallthru
      _
    // Predicated region
    $region26: #{tpu_custom_call.1} parent=1 // pred_check
      _
    $region27: #{tpu_custom_call.1} parent=1 // pred_check_branch
      %73 = sbr.rel (0) target = $region29
    $region28: #{tpu_custom_call.1} parent=1 // pred_region
      _
    $region29: #{tpu_custom_call.1} parent=1 // pred_fallthru
      _
    // Predicated region
    $region30: #{tpu_custom_call.1} parent=1 // pred_check
      _
    $region31: #{tpu_custom_call.1} parent=1 // pred_check_branch
      %75 = sbr.rel (0) target = $region33
    $region32: #{tpu_custom_call.1} parent=1 // pred_region
      _
    $region33: #{tpu_custom_call.1} parent=1 // pred_fallthru
      _
    // Predicated region
    $region34: #{tpu_custom_call.1} parent=1 // pred_check
      _
    $region35: #{tpu_custom_call.1} parent=1 // pred_check_branch
      %77 = sbr.rel (0) target = $region37
    $region36: #{tpu_custom_call.1} parent=1 // pred_region
      %79 = vsyncadd [#allocation8], 0
      %s80 = sshll.u32 %s8, 4
      %s81 = int_to_ptr.hbm [resolvable:$true] %s80
      %s82 = sshll.u32 [#allocation9], 4
      %s83 = int_to_ptr.vmem [resolvable:$true] %s82
      %88 = dma.hbm_to_vmem [thread:$0]  %s81, 384, %s83, [#allocation8], 128, 128, 8
    $region37: #{tpu_custom_call.1} parent=1 // pred_fallthru
      _
    // Predicated region
    $region38: #{tpu_custom_call.1} parent=1 // pred_check
      _
    $region39: #{tpu_custom_call.1} parent=1 // pred_check_branch
      %90 = sbr.rel (0) target = $region41
    $region40: #{tpu_custom_call.1} parent=1 // pred_region
      _
    $region41: #{tpu_custom_call.1} parent=1 // pred_fallthru
      _
    // Predicated region
    $region42: #{tpu_custom_call.1} parent=1 // pred_check
      _
    $region43: #{tpu_custom_call.1} parent=1 // pred_check_branch
      %92 = sbr.rel (0) target = $region45
    $region44: #{tpu_custom_call.1} parent=1 // pred_region
      _
    $region45: #{tpu_custom_call.1} parent=1 // pred_fallthru
      _
    // Predicated region
    $region46: #{tpu_custom_call.1} parent=1 // pred_check
      _
    $region47: #{tpu_custom_call.1} parent=1 // pred_check_branch
      %94 = sbr.rel (0) target = $region49
    $region48: #{tpu_custom_call.1} parent=1 // pred_region
      _
    $region49: #{tpu_custom_call.1} parent=1 // pred_fallthru
      _
    // Predicated region
    $region50: #{tpu_custom_call.1} parent=1 // pred_check
      _
    $region51: #{tpu_custom_call.1} parent=1 // pred_check_branch
      %96 = sbr.rel (0) target = $region53
    $region52: #{tpu_custom_call.1} parent=1 // pred_region
      %98 = dma.done [#allocation3], 512
    $region53: #{tpu_custom_call.1} parent=1 // pred_fallthru
      _
    // Predicated region
    $region54: #{tpu_custom_call.1} parent=1 // pred_check
      _
    $region55: #{tpu_custom_call.1} parent=1 // pred_check_branch
      %100 = sbr.rel (0) target = $region57
    $region56: #{tpu_custom_call.1} parent=1 // pred_region
      %102 = dma.done [#allocation5], 128
    $region57: #{tpu_custom_call.1} parent=1 // pred_fallthru
      _
    // Predicated region
    $region58: #{tpu_custom_call.1} parent=1 // pred_check
      _
    $region59: #{tpu_custom_call.1} parent=1 // pred_check_branch
      %104 = sbr.rel (0) target = $region61
    $region60: #{tpu_custom_call.1} parent=1 // pred_region
      %106 = dma.done [#allocation5], 384
    $region61: #{tpu_custom_call.1} parent=1 // pred_fallthru
      _
    // Predicated region
    $region62: #{tpu_custom_call.1} parent=1 // pred_check
      _
    $region63: #{tpu_custom_call.1} parent=1 // pred_check_branch
      %108 = sbr.rel (0) target = $region65
    $region64: #{tpu_custom_call.1} parent=1 // pred_region
      %110 = dma.done [#allocation8], 8192
    $region65: #{tpu_custom_call.1} parent=1 // pred_fallthru
      _
    // Predicated region
    $region66: #{tpu_custom_call.1} parent=1 // pred_check
      _
    $region67: #{tpu_custom_call.1} parent=1 // pred_check_branch
      %112 = sbr.rel (0) target = $region69
    $region68: #{tpu_custom_call.1} parent=1 // pred_region
      %114 = dma.done [#allocation8], 384
    $region69: #{tpu_custom_call.1} parent=1 // pred_fallthru
      _
    %v115 = vld [vmem:[%s0] sm:$0xff]
    %v116 = vld [vmem:[#allocation6] sm:$0xff]
    %v117 = vld [vmem:[#allocation6 + $0x8] sm:$0xff]
    %v118 = vld [vmem:[#allocation6 + $0x10] sm:$0xf]
    %v119 = vld [vmem:[#allocation2] sm:$0xff]
    %v120 = vld [vmem:[#allocation2 + $0x8] sm:$0xff]
    %v121 = vld [vmem:[#allocation2 + $0x10] sm:$0xff]
    %v122 = vld [vmem:[#allocation2 + $0x18] sm:$0xff]
    %v123 = vld [vmem:[#allocation7] sm:$0xff]
    %v124 = vld [vmem:[#allocation7 + $0x8] sm:$0xff]
    %v125 = vld [vmem:[#allocation7 + $0x10] sm:$0xff]
    %v126 = vld [vmem:[#allocation7 + $0x18] sm:$0xff]
    %v127 = vld [vmem:[#allocation7 + $0x20] sm:$0xff]
    %v128 = vld [vmem:[#allocation7 + $0x28] sm:$0xff]
    %v129 = vld [vmem:[#allocation7 + $0x30] sm:$0xff]
    %v130 = vld [vmem:[#allocation7 + $0x38] sm:$0xff]
    %v131 = vld [vmem:[#allocation7 + $0x40] sm:$0xff]
    %v132 = vld [vmem:[#allocation7 + $0x48] sm:$0xff]
    %v133 = vld [vmem:[#allocation7 + $0x50] sm:$0xff]
    %v134 = vld [vmem:[#allocation7 + $0x58] sm:$0xff]
    %v135 = vld [vmem:[#allocation7 + $0x60] sm:$0xff]
    %v136 = vld [vmem:[#allocation7 + $0x68] sm:$0xff]
    %v137 = vld [vmem:[#allocation7 + $0x70] sm:$0xff]
    %v138 = vld [vmem:[#allocation7 + $0x78] sm:$0xff]
    %v139 = vld [vmem:[#allocation7 + $0x80] sm:$0xff]
    %v140 = vld [vmem:[#allocation7 + $0x88] sm:$0xff]
    %v141 = vld [vmem:[#allocation7 + $0x90] sm:$0xff]
    %v142 = vld [vmem:[#allocation7 + $0x98] sm:$0xff]
    %v143 = vld [vmem:[#allocation7 + $0xa0] sm:$0xff]
    %v144 = vld [vmem:[#allocation7 + $0xa8] sm:$0xff]
    %v145 = vld [vmem:[#allocation7 + $0xb0] sm:$0xff]
    %v146 = vld [vmem:[#allocation7 + $0xb8] sm:$0xff]
    %v147 = vld [vmem:[#allocation7 + $0xc0] sm:$0xff]
    %v148 = vld [vmem:[#allocation7 + $0xc8] sm:$0xff]
    %v149 = vld [vmem:[#allocation7 + $0xd0] sm:$0xff]
    %v150 = vld [vmem:[#allocation7 + $0xd8] sm:$0xff]
    %v151 = vld [vmem:[#allocation7 + $0xe0] sm:$0xff]
    %v152 = vld [vmem:[#allocation7 + $0xe8] sm:$0xff]
    %v153 = vld [vmem:[#allocation7 + $0xf0] sm:$0xff]
    %v154 = vld [vmem:[#allocation7 + $0xf8] sm:$0xff]
    %v155 = vld [vmem:[#allocation7 + $0x100] sm:$0xff]
    %v156 = vld [vmem:[#allocation7 + $0x108] sm:$0xff]
    %v157 = vld [vmem:[#allocation7 + $0x110] sm:$0xff]
    %v158 = vld [vmem:[#allocation7 + $0x118] sm:$0xff]
    %v159 = vld [vmem:[#allocation7 + $0x120] sm:$0xff]
    %v160 = vld [vmem:[#allocation7 + $0x128] sm:$0xff]
    %v161 = vld [vmem:[#allocation7 + $0x130] sm:$0xff]
    %v162 = vld [vmem:[#allocation7 + $0x138] sm:$0xff]
    %v163 = vld [vmem:[#allocation7 + $0x140] sm:$0xff]
    %v164 = vld [vmem:[#allocation7 + $0x148] sm:$0xff]
    %v165 = vld [vmem:[#allocation7 + $0x150] sm:$0xff]
    %v166 = vld [vmem:[#allocation7 + $0x158] sm:$0xff]
    %v167 = vld [vmem:[#allocation7 + $0x160] sm:$0xff]
    %v168 = vld [vmem:[#allocation7 + $0x168] sm:$0xff]
    %v169 = vld [vmem:[#allocation7 + $0x170] sm:$0xff]
    %v170 = vld [vmem:[#allocation7 + $0x178] sm:$0xff]
    %v171 = vld [vmem:[#allocation7 + $0x180] sm:$0xff]
    %v172 = vld [vmem:[#allocation7 + $0x188] sm:$0xff]
    %v173 = vld [vmem:[#allocation7 + $0x190] sm:$0xff]
    %v174 = vld [vmem:[#allocation7 + $0x198] sm:$0xff]
    %v175 = vld [vmem:[#allocation7 + $0x1a0] sm:$0xff]
    %v176 = vld [vmem:[#allocation7 + $0x1a8] sm:$0xff]
    %v177 = vld [vmem:[#allocation7 + $0x1b0] sm:$0xff]
    %v178 = vld [vmem:[#allocation7 + $0x1b8] sm:$0xff]
    %v179 = vld [vmem:[#allocation7 + $0x1c0] sm:$0xff]
    %v180 = vld [vmem:[#allocation7 + $0x1c8] sm:$0xff]
    %v181 = vld [vmem:[#allocation7 + $0x1d0] sm:$0xff]
    %v182 = vld [vmem:[#allocation7 + $0x1d8] sm:$0xff]
    %v183 = vld [vmem:[#allocation7 + $0x1e0] sm:$0xff]
    %v184 = vld [vmem:[#allocation7 + $0x1e8] sm:$0xff]
    %v185 = vld [vmem:[#allocation7 + $0x1f0] sm:$0xff]
    %v186 = vld [vmem:[#allocation7 + $0x1f8] sm:$0xff]
    %187 = vmatpush.msra.mxu0 %v138
    %188 = vmatpush.msra.mxu0 %v137
    %189 = vmatpush.msra.mxu0 %v136
    %190 = vmatpush.msra.mxu0 %v135
    %191 = vmatpush.msra.mxu0 %v134
    %192 = vmatpush.msra.mxu0 %v133
    %193 = vmatpush.msra.mxu0 %v132
    %194 = vmatpush.msra.mxu0 %v131
    %195 = vmatpush.msra.mxu0 %v130
    %196 = vmatpush.msra.mxu0 %v129
    %197 = vmatpush.msra.mxu0 %v128
    %198 = vmatpush.msra.mxu0 %v127
    %199 = vmatpush.msra.mxu0 %v126
    %200 = vmatpush.msra.mxu0 %v125
    %201 = vmatpush.msra.mxu0 %v124
    %202 = vmatpush.msra.mxu0 %v123
    %203 = vmatmul.f32.gmra.mxu0 %v119
    %v204 = vpop.f32.mrf.mxu0
    %v205 = vadd.f32 0.0, %v204
    %206 = vdwg.mxu0
    %207 = vmatpush.msra.mxu0 %v154
    %208 = vmatpush.msra.mxu0 %v153
    %209 = vmatpush.msra.mxu0 %v152
    %210 = vmatpush.msra.mxu0 %v151
    %211 = vmatpush.msra.mxu0 %v150
    %212 = vmatpush.msra.mxu0 %v149
    %213 = vmatpush.msra.mxu0 %v148
    %214 = vmatpush.msra.mxu0 %v147
    %215 = vmatpush.msra.mxu0 %v146
    %216 = vmatpush.msra.mxu0 %v145
    %217 = vmatpush.msra.mxu0 %v144
    %218 = vmatpush.msra.mxu0 %v143
    %219 = vmatpush.msra.mxu0 %v142
    %220 = vmatpush.msra.mxu0 %v141
    %221 = vmatpush.msra.mxu0 %v140
    %222 = vmatpush.msra.mxu0 %v139
    %223 = vmatmul.f32.gmra.mxu0 %v120
    %v224 = vpop.f32.mrf.mxu0
    %v225 = vadd.f32 %v205, %v224
    %226 = vdwg.mxu0
    %227 = vmatpush.msra.mxu0 %v170
    %228 = vmatpush.msra.mxu0 %v169
    %229 = vmatpush.msra.mxu0 %v168
    %230 = vmatpush.msra.mxu0 %v167
    %231 = vmatpush.msra.mxu0 %v166
    %232 = vmatpush.msra.mxu0 %v165
    %233 = vmatpush.msra.mxu0 %v164
    %234 = vmatpush.msra.mxu0 %v163
    %235 = vmatpush.msra.mxu0 %v162
    %236 = vmatpush.msra.mxu0 %v161
    %237 = vmatpush.msra.mxu0 %v160
    %238 = vmatpush.msra.mxu0 %v159
    %239 = vmatpush.msra.mxu0 %v158
    %240 = vmatpush.msra.mxu0 %v157
    %241 = vmatpush.msra.mxu0 %v156
    %242 = vmatpush.msra.mxu0 %v155
    %243 = vmatmul.f32.gmra.mxu0 %v121
    %v244 = vpop.f32.mrf.mxu0
    %v245 = vadd.f32 %v225, %v244
    %246 = vdwg.mxu0
    %247 = vmatpush.msra.mxu0 %v186
    %248 = vmatpush.msra.mxu0 %v185
    %249 = vmatpush.msra.mxu0 %v184
    %250 = vmatpush.msra.mxu0 %v183
    %251 = vmatpush.msra.mxu0 %v182
    %252 = vmatpush.msra.mxu0 %v181
    %253 = vmatpush.msra.mxu0 %v180
    %254 = vmatpush.msra.mxu0 %v179
    %255 = vmatpush.msra.mxu0 %v178
    %256 = vmatpush.msra.mxu0 %v177
    %257 = vmatpush.msra.mxu0 %v176
    %258 = vmatpush.msra.mxu0 %v175
    %259 = vmatpush.msra.mxu0 %v174
    %260 = vmatpush.msra.mxu0 %v173
    %261 = vmatpush.msra.mxu0 %v172
    %262 = vmatpush.msra.mxu0 %v171
    %263 = vmatmul.f32.gmra.mxu0 %v122
    %v264 = vpop.f32.mrf.mxu0
    %v265 = vadd.f32 %v245, %v264
    %266 = vdwg.mxu0
    %vm267 = vcmask 162816
    %v269 = vsel %vm267, %v115, 0
    %vm271 = vcmask 1043456
    %v273 = vsel %vm271, %v118, 0
    %275 = vmatpush.msra.mxu0 0.0
    %276 = vmatpush.msra.mxu0 0.0
    %277 = vmatpush.msra.mxu0 0.0
    %278 = vmatpush.msra.mxu0 0.0
    %279 = vmatpush.msra.mxu0 0.0
    %280 = vmatpush.msra.mxu0 0.0
    %281 = vmatpush.msra.mxu0 0.0
    %282 = vmatpush.msra.mxu0 0.0
    %283 = vmatpush.msra.mxu0 0.0
    %284 = vmatpush.msra.mxu0 0.0
    %285 = vmatpush.msra.mxu0 0.0
    %286 = vmatpush.msra.mxu0 0.0
    %287 = vmatpush.msra.mxu0 0.0
    %288 = vmatpush.msra.mxu0 %v273
    %289 = vmatpush.msra.mxu0 %v117
    %290 = vmatpush.msra.mxu0 %v116
    %291 = vmatmul.f32.gmra.mxu0 %v269
    %v292 = vpop.f32.mrf.mxu0
    %v293 = vadd.f32 %v265, %v292
    %294 = vdwg.mxu0
    %v295 = vld [vmem:[%s2] sm:$0xff]
    %v296 = vld [vmem:[%s6] sm:$0x3]
    %vm297 = vcmask 15360
    %v299 = vsel %vm297, %v295, 0
    %vm301 = vcmask 1041408
    %v303 = vsel %vm301, %v296, 0
    %305 = vmatpush.msra.mxu0 0.0
    %306 = vmatpush.msra.mxu0 0.0
    %307 = vmatpush.msra.mxu0 0.0
    %308 = vmatpush.msra.mxu0 0.0
    %309 = vmatpush.msra.mxu0 0.0
    %310 = vmatpush.msra.mxu0 0.0
    %311 = vmatpush.msra.mxu0 0.0
    %312 = vmatpush.msra.mxu0 0.0
    %313 = vmatpush.msra.mxu0 0.0
    %314 = vmatpush.msra.mxu0 0.0
    %315 = vmatpush.msra.mxu0 0.0
    %316 = vmatpush.msra.mxu0 0.0
    %317 = vmatpush.msra.mxu0 0.0
    %318 = vmatpush.msra.mxu0 0.0
    %319 = vmatpush.msra.mxu0 0.0
    %320 = vmatpush.msra.mxu0 %v303
    %321 = vmatmul.f32.gmra.mxu0 %v299
    %v322 = vpop.f32.mrf.mxu0
    %v323 = vadd.f32 0.0, %v322
    %324 = vdwg.mxu0
    %v325 = vadd.f32 %v293, %v323
    %v326 = vld [vmem:[%s7] sm:$0x1]
    %v328 = vperm.slane %v326, 0
    %v330 = vadd.f32 %v325, %v328
    %v331 = vld [vmem:[#allocation4] sm:$0xff]
    %v332 = vld [vmem:[#allocation9] sm:$0xff]
    %v333 = vld [vmem:[#allocation9 + $0x8] sm:$0xff]
    %v334 = vld [vmem:[#allocation9 + $0x10] sm:$0x1f]
    %v335 = vld [vmem:[%s9] sm:$0x1]
    %v337 = vperm.slane %v335, 0
    %vm339 = vcmask 171008
    %v341 = vsel %vm339, %v331, 0
    %vm343 = vcmask 1044480
    %v345 = vsel %vm343, %v334, 0
    %347 = vmatpush.msra.mxu0 0.0
    %348 = vmatpush.msra.mxu0 0.0
    %349 = vmatpush.msra.mxu0 0.0
    %350 = vmatpush.msra.mxu0 0.0
    %351 = vmatpush.msra.mxu0 0.0
    %352 = vmatpush.msra.mxu0 0.0
    %353 = vmatpush.msra.mxu0 0.0
    %354 = vmatpush.msra.mxu0 0.0
    %355 = vmatpush.msra.mxu0 0.0
    %356 = vmatpush.msra.mxu0 0.0
    %357 = vmatpush.msra.mxu0 0.0
    %358 = vmatpush.msra.mxu0 0.0
    %359 = vmatpush.msra.mxu0 0.0
    %360 = vmatpush.msra.mxu0 %v345
    %361 = vmatpush.msra.mxu0 %v333
    %362 = vmatpush.msra.mxu0 %v332
    %363 = vmatmul.f32.gmra.mxu0 %v341
    %v364 = vpop.f32.mrf.mxu0
    %v365 = vadd.f32 %v337, %v364
    %366 = vdwg.mxu0
    %v367 = vmul.f32 %v330, %v365
    %v368 = vlaneseq
    %v369 = vand.u32 %v368, 127
    %vm370 = vcmp.lt.s32.totalorder %v369, 64
    %v371 = vsel %vm370, %v367, 0.0
    %372 = vadd.xlane.f32.xlu0 %v371
    %v373 = vpop.xlane.xlu0 %372
    %v374 = vsel %vm370, 0.0, %v367
    %375 = vadd.xlane.f32.xlu0 %v374
    %v376 = vpop.xlane.xlu0 %375
    %vm377 = vcmp.eq.s32.totalorder %v369, 0
    %v378 = vsel %vm377, %v373, %v376
    %v379 = vmul.f32 %v378, 0.5
    %v380 = vmul.f32 %v378, 0.70710677
    %v381 = vmul.f32 %v380, %v380
    %v382 = vmin.f32 16.0, %v381
    %v383 = vmul.f32 %v382, 2.1237322e-06
    %v384 = vadd.f32 %v383, 0.00028619796
    %v385 = vmul.f32 %v382, %v384
    %v386 = vadd.f32 %v385, 0.0036580483
    %v387 = vmul.f32 %v382, %v386
    %v388 = vadd.f32 %v387, 0.05243302
    %v389 = vmul.f32 %v382, %v388
    %v390 = vadd.f32 %v389, 0.18741608
    %v391 = vmul.f32 %v382, %v390
    %v392 = vadd.f32 %v391, 1.1283791
    %v393 = vmul.f32 %v380, %v392
    %v394 = vmul.f32 %v382, 3.8918573e-05
    %v395 = vadd.f32 %v394, 0.001143296
    %v396 = vmul.f32 %v382, %v395
    %v397 = vadd.f32 %v396, 0.014752088
    %v398 = vmul.f32 %v382, %v397
    %v399 = vadd.f32 %v398, 0.112945676
    %v400 = vmul.f32 %v382, %v399
    %v401 = vadd.f32 %v400, 0.4994258
    %v402 = vmul.f32 %v382, %v401
    %v403 = vadd.f32 %v402, 1.0
    %v404 = vrcp.pop %v403
    %v405 = vmul.f32 %v403, %v404
    %v406 = vsub.f32 1.0, %v405
    %v407 = vmul.f32 %v404, %v406
    %v408 = vadd.f32 %v404, %v407
    %vm409 = vweird.f32 %v403
    %vm410 = vweird.f32 %v404
    %vm411 = vmor %vm409, %vm410
    %v412 = vsel %vm411, %v404, %v408
    %v413 = vand.u32 2147483647, %v403
    %vm414 = vcmp.eq.f32.partialorder %v413, 8.507059e+37
    %v415 = vand.u32 %v403, 2147483648
    %v416 = vor.u32 1.1754944e-38, %v415
    %v417 = vsel %vm414, %v416, %v412
    %v418 = vmul.f32 %v393, %v417
    %v419 = vmin.f32 %v418, 1.0
    %v420 = vmax.f32 %v419, -1.0
    %v421 = vadd.f32 %v420, 1.0
    %v422 = vmul.f32 %v379, %v421
    %v423 = vld [vmem:[%s10] sm:$0x1]
    %v425 = vperm.slane %v423, 0
    %v427 = vmul.f32 %v422, %v425
    %v428 = vld [vmem:[%s11] sm:$0x1]
    %v430 = vperm.slane %v428, 0
    %v432 = vadd.f32 %v427, %v430
    %433 = vst.msk [vmem:[%s12] sm:$0xff] %vm297, %v432
    // Predicated region
    $region70: #{tpu_custom_call.1} parent=1 // pred_check
      _
    $region71: #{tpu_custom_call.1} parent=1 // pred_check_branch
      %435 = sbr.rel (0) target = $region73
    $region72: #{tpu_custom_call.1} parent=1 // pred_region
      _
    $region73: #{tpu_custom_call.1} parent=1 // pred_fallthru
      _
    // Predicated region
    $region74: #{tpu_custom_call.1} parent=1 // pred_check
      _
    $region75: #{tpu_custom_call.1} parent=1 // pred_check_branch
      %437 = sbr.rel (0) target = $region77
    $region76: #{tpu_custom_call.1} parent=1 // pred_region
      _
    $region77: #{tpu_custom_call.1} parent=1 // pred_fallthru
      _
    %438 = vsyncpa [#allocation3], 1
    %439 = vsyncpa [#allocation5], 1
    %440 = vsyncpa [#allocation8], 1

</llo_original>
